<compile_context>
chip_gen: v6e
topology: v6e:2x2x1
jax: 0.10.0
libtpu: 0.0.40
codegen_flags: <defaults>
</compile_context>

<pallas_src>
import functools

import jax
import jax.numpy as jnp
from jax import lax
from jax.experimental import pallas as pl
from jax.experimental.pallas import tpu as pltpu


def _quant_multi_loss_kernel(labels_ref, x_ref, yreg_ref, out_ref, *, n_rows, tb, rb):
    """Accumulates raw partial sums into a per-core (8,128) block:
         out[0,0] += sum over valid rows of (logsumexp(x_r) - x_r[label_r])
         out[0,1] += sum over valid rows/cols of (x - y_reg)^2
    """
    p = pl.program_id(0)              # parallel (core-split) axis
    i = pl.program_id(1)              # reduction axis: row blocks for this core
    n_cols = x_ref.shape[-1]
    # Unclamped global row-block index. The BlockSpec index_map clamps out-of-range
    # steps onto the last real block; the row-validity mask below makes those steps
    # (and any garbage tail rows of partial blocks) contribute exactly zero.
    g = p * pl.num_programs(1) + i

    @pl.when(i == 0)
    def _():
        out_ref[...] = jnp.zeros_like(out_ref)

    def chunk(j, carry):
        ce_acc, se_acc = carry
        r0 = pl.multiple_of(j * rb, rb)
        xf = x_ref[pl.ds(r0, rb), :].astype(jnp.float32)        # (rb, C)
        yrf = yreg_ref[pl.ds(r0, rb), :].astype(jnp.float32)    # (rb, C)
        lbl = labels_ref[pl.ds(r0, rb), :]                       # (rb, 1) int32

        row = jax.lax.broadcasted_iota(jnp.int32, (rb, 1), 0) + (g * tb + r0)
        valid = row < n_rows                                     # (rb, 1) bool

        # Numerically stable cross entropy per row: logsumexp(x) - x[target].
        m = jnp.max(xf, axis=-1, keepdims=True)
        lse = m + jnp.log(jnp.sum(jnp.exp(xf - m), axis=-1, keepdims=True))
        col = jax.lax.broadcasted_iota(jnp.int32, (rb, n_cols), 1)
        tgt = jnp.sum(jnp.where(col == lbl, xf, 0.0), axis=-1, keepdims=True)
        ce_rows = jnp.where(valid, lse - tgt, 0.0)               # select => NaN-safe

        d = xf - yrf
        se_rows = jnp.where(valid, jnp.sum(d * d, axis=-1, keepdims=True), 0.0)

        return ce_acc + jnp.sum(ce_rows), se_acc + jnp.sum(se_rows)

    ce_p, se_p = lax.fori_loop(0, tb // rb, chunk,
                               (jnp.float32(0.0), jnp.float32(0.0)))

    # Lane-dense, full-vreg accumulation: ce partial in [0,0], se partial in [0,1].
    ri = jax.lax.broadcasted_iota(jnp.int32, (8, 128), 0)
    li = jax.lax.broadcasted_iota(jnp.int32, (8, 128), 1)
    out_ref[...] += (jnp.where((ri == 0) & (li == 0), ce_p, 0.0) +
                     jnp.where((ri == 0) & (li == 1), se_p, 0.0))


def quant_multi_loss(x, y_classification, y_regression, *, alpha=0.5, beta=0.5,
                     max_rows_per_block=16384):
    """Returns (total_loss, classification_loss, regression_loss) as f32 scalars."""
    N, C = x.shape
    x_bytes = jnp.dtype(x.dtype).itemsize
    y_bytes = jnp.dtype(y_regression.dtype).itemsize

    if N < 8:
        rb = tb = N                                   # single full-extent block
    else:
        n_aligned = (N // 8) * 8
        rb = min(512, n_aligned, max(8, (min(max_rows_per_block, n_aligned) // 8) * 8))
        # VMEM-aware block size: (tb,1) int32 labels lane-pad to 512 B/row in VMEM;
        # keep double-buffered inputs around <=16 MiB while making each block multi-MB
        # so the ~0.35us per-grid-step overhead is amortised.
        vmem_row_bytes = 512 + C * (x_bytes + y_bytes)
        tb = ((8 << 20) // vmem_row_bytes) // rb * rb
        tb = max(tb, rb)
        tb = min(tb, max(rb, (max_rows_per_block // rb) * rb))
        tb = min(tb, (n_aligned // rb) * rb)

    total_blocks = pl.cdiv(N, tb)
    num_cores = 2 if total_blocks >= 2 else 1         # megacore split (v7x); loop on 1-TC chips
    spc = pl.cdiv(total_blocks, num_cores)            # reduction steps per core

    def in_map(p, i):
        g = jnp.minimum(p * spc + i, total_blocks - 1)
        return (g, 0)

    labels = y_classification.astype(jnp.int32).reshape(N, 1)

    kernel = functools.partial(_quant_multi_loss_kernel, n_rows=N, tb=tb, rb=rb)

    cost = pl.CostEstimate(
        flops=int(10 * N * C),
        transcendentals=int(N * (C + 1)),
        bytes_accessed=int(N * (C * (x_bytes + y_bytes) + 4) + num_cores * 8 * 128 * 4),
    )

    parts = pl.pallas_call(
        kernel,
        out_shape=jax.ShapeDtypeStruct((num_cores, 8, 128), jnp.float32),
        grid=(num_cores, spc),
        in_specs=[
            pl.BlockSpec((tb, 1), in_map),            # class labels (int32)
            pl.BlockSpec((tb, C), in_map),            # x / logits (native dtype)
            pl.BlockSpec((tb, C), in_map),            # regression targets (native dtype)
        ],
        out_specs=pl.BlockSpec((None, 8, 128), lambda p, i: (p, 0, 0)),
        compiler_params=pltpu.CompilerParams(
            dimension_semantics=("parallel", "arbitrary"),
            vmem_limit_bytes=40 * 1024 * 1024,
        ),
        cost_estimate=cost,
    )(labels, x, y_regression)

    # Trivial per-core combine + alpha/beta scaling (scalar work, done outside the kernel).
    ce_sum = jnp.sum(parts[:, 0, 0])
    se_sum = jnp.sum(parts[:, 0, 1])
    classification_loss = (alpha / N) * ce_sum
    regression_loss = (beta / (N * C)) * se_sum
    total = classification_loss + regression_loss
    return total, classification_loss, regression_loss


# ----------------------- pure-JAX reference (for checking) -----------------------
def ref_quant_multi_loss(x, y_cls, y_reg, alpha=0.5, beta=0.5):
    xf = x.astype(jnp.float32)
    logp = jax.nn.log_softmax(xf, axis=-1)
    ce = -jnp.mean(jnp.take_along_axis(logp, y_cls[:, None].astype(jnp.int32), axis=-1))
    mse = jnp.mean((xf - y_reg.astype(jnp.float32)) ** 2)
    cls = alpha * ce
    reg = beta * mse
    return cls + reg, cls, reg


if __name__ == "__main__":
    key = jax.random.PRNGKey(0)
    kx, ky, kr = jax.random.split(key, 3)

    # Primary small test: batch=8 samples, 32 classes / regression dims.
    N, C = 8, 32
    x = jax.random.normal(kx, (N, C), jnp.float32)
    y_classification = jax.random.randint(ky, (N,), 0, C, jnp.int32)
    y_regression = jax.random.normal(kr, (N, C), jnp.float32)

    tot, cls, reg = quant_multi_loss(x, y_classification, y_regression, alpha=0.5, beta=0.5)
    tot, cls, reg = jax.block_until_ready((tot, cls, reg))

    rtot, rcls, rreg = ref_quant_multi_loss(x, y_classification, y_regression, 0.5, 0.5)
    assert bool(jnp.allclose(cls, rcls, atol=1e-5, rtol=1e-5)), (cls, rcls)
    assert bool(jnp.allclose(reg, rreg, atol=1e-5, rtol=1e-5)), (reg, rreg)
    assert bool(jnp.allclose(tot, rtot, atol=1e-5, rtol=1e-5)), (tot, rtot)

    # Ragged / multi-block check: exercises partial tail block, out-of-range block-index
    # clamping and the 2-way core split.
    N2 = 20
    x2 = jax.random.normal(kx, (N2, C), jnp.float32)
    y_cls2 = jax.random.randint(ky, (N2,), 0, C, jnp.int32)
    y_reg2 = jax.random.normal(kr, (N2, C), jnp.float32)
    out2 = jax.block_until_ready(
        quant_multi_loss(x2, y_cls2, y_reg2, alpha=0.3, beta=0.7, max_rows_per_block=8))
    ref2 = ref_quant_multi_loss(x2, y_cls2, y_reg2, 0.3, 0.7)
    for a, b in zip(out2, ref2):
        assert bool(jnp.allclose(a, b, atol=1e-5, rtol=1e-5)), (a, b)

    print("KERNEL_OK")
</pallas_src>

<mosaic_0001>
module attributes {stable_mosaic.version = 11 : i64} {
  func.func @_quant_multi_loss_kernel(%arg0: i32, %arg1: i32, %arg2: memref<8x1xi32, #tpu.memory_space<vmem>>, %arg3: memref<8x32xf32, #tpu.memory_space<vmem>>, %arg4: memref<8x32xf32, #tpu.memory_space<vmem>>, %arg5: memref<1x8x128xf32, #tpu.memory_space<vmem>>) attributes {dimension_semantics = [#tpu.dimension_semantics<parallel>, #tpu.dimension_semantics<arbitrary>], iteration_bounds = array<i64: 1, 1>, scalar_prefetch = 0 : i64, scratch_operands = 0 : i64, tpu.core_type = #tpu.core_type<tc>, window_params = [{transform_indices = @transform_0, window_bounds = array<i64: 8, 1>}, {transform_indices = @transform_1, window_bounds = array<i64: 8, 32>}, {transform_indices = @transform_2, window_bounds = array<i64: 8, 32>}, {transform_indices = @transform_3, window_bounds = array<i64: 1, 8, 128>}]} {
    %c1_i32 = arith.constant 1 : i32
    %0 = arith.muli %arg0, %c1_i32 : i32
    %1 = arith.addi %0, %arg1 : i32
    %c0_i32 = arith.constant 0 : i32
    %2 = arith.cmpi eq, %arg1, %c0_i32 : i32
    %3 = arith.extui %2 : i1 to i32
    %c0_i32_0 = arith.constant 0 : i32
    %4 = arith.cmpi ne, %3, %c0_i32_0 : i32
    scf.if %4 {
      %cst_29 = arith.constant 0.000000e+00 : f32
      %80 = vector.broadcast %cst_29 : f32 to vector<8x128xf32>
      %c0_30 = arith.constant 0 : index
      %c0_31 = arith.constant 0 : index
      %c0_32 = arith.constant 0 : index
      %81 = vector.load %arg5[%c0_30, %c0_31, %c0_32] : memref<1x8x128xf32, #tpu.memory_space<vmem>>, vector<1x8x128xf32>
      %82 = vector.shape_cast %81 : vector<1x8x128xf32> to vector<8x128xf32>
      %83 = vector.shape_cast %80 : vector<8x128xf32> to vector<1x8x128xf32>
      tpu.vector_store %arg5[%c0_30, %c0_31, %c0_32], %83 {strides = array<i32>} : memref<1x8x128xf32, #tpu.memory_space<vmem>>, vector<1x8x128xf32>,
    } else {
    }
    %cst = arith.constant 0.000000e+00 : f32
    %cst_1 = arith.constant 0.000000e+00 : f32
    %c0_i32_2 = arith.constant 0 : i32
    %c8_i32 = arith.constant 8 : i32
    %5 = arith.muli %c0_i32_2, %c8_i32 : i32
    %6 = tpu.assume_multiple %5, 8 : i32
    %7 = arith.index_cast %6 : i32 to index
    %c0 = arith.constant 0 : index
    %8 = vector.load %arg3[%7, %c0] : memref<8x32xf32, #tpu.memory_space<vmem>>, vector<8x32xf32>
    %9 = arith.index_cast %6 : i32 to index
    %c0_3 = arith.constant 0 : index
    %10 = vector.load %arg4[%9, %c0_3] : memref<8x32xf32, #tpu.memory_space<vmem>>, vector<8x32xf32>
    %11 = arith.index_cast %6 : i32 to index
    %c0_4 = arith.constant 0 : index
    %12 = vector.load %arg2[%11, %c0_4] : memref<8x1xi32, #tpu.memory_space<vmem>>, vector<8x1xi32>
    %13 = tpu.iota {dimensions = array<i32: 0>} : vector<8x1xi32>
    %c8_i32_5 = arith.constant 8 : i32
    %14 = arith.muli %1, %c8_i32_5 : i32
    %15 = arith.addi %14, %6 : i32
    %16 = vector.broadcast %15 : i32 to vector<8x1xi32>
    %17 = arith.addi %13, %16 : vector<8x1xi32>
    %c8_i32_6 = arith.constant 8 : i32
    %18 = vector.broadcast %c8_i32_6 : i32 to vector<8x1xi32>
    %19 = arith.cmpi slt, %17, %18 : vector<8x1xi32>
    %cst_7 = arith.constant dense<0xFF800000> : vector<8xf32>
    %20 = vector.multi_reduction <maximumf>, %8, %cst_7 [1] : vector<8x32xf32> to vector<8xf32>
    %21 = vector.shape_cast %20 : vector<8xf32> to vector<8x1xf32>
    %22 = vector.broadcast %21 : vector<8x1xf32> to vector<8x32xf32>
    %23 = arith.subf %8, %22 : vector<8x32xf32>
    %24 = math.exp %23 : vector<8x32xf32>
    %cst_8 = arith.constant dense<0.000000e+00> : vector<8xf32>
    %25 = vector.multi_reduction <add>, %24, %cst_8 [1] : vector<8x32xf32> to vector<8xf32>
    %26 = vector.shape_cast %25 : vector<8xf32> to vector<8x1xf32>
    %27 = math.log %26 : vector<8x1xf32>
    %28 = arith.addf %21, %27 : vector<8x1xf32>
    %29 = tpu.iota {dimensions = array<i32: 1>} : vector<8x32xi32>
    %30 = vector.broadcast %12 : vector<8x1xi32> to vector<8x32xi32>
    %31 = arith.cmpi eq, %29, %30 : vector<8x32xi32>
    %cst_9 = arith.constant 0.000000e+00 : f32
    %32 = vector.broadcast %cst_9 : f32 to vector<8x32xf32>
    %33 = arith.select %31, %8, %32 : vector<8x32xi1>, vector<8x32xf32>
    %cst_10 = arith.constant dense<0.000000e+00> : vector<8xf32>
    %34 = vector.multi_reduction <add>, %33, %cst_10 [1] : vector<8x32xf32> to vector<8xf32>
    %35 = vector.shape_cast %34 : vector<8xf32> to vector<8x1xf32>
    %36 = arith.subf %28, %35 : vector<8x1xf32>
    %cst_11 = arith.constant 0.000000e+00 : f32
    %37 = vector.broadcast %cst_11 : f32 to vector<8x1xf32>
    %38 = arith.select %19, %36, %37 : vector<8x1xi1>, vector<8x1xf32>
    %39 = arith.subf %8, %10 : vector<8x32xf32>
    %40 = arith.mulf %39, %39 : vector<8x32xf32>
    %cst_12 = arith.constant dense<0.000000e+00> : vector<8xf32>
    %41 = vector.multi_reduction <add>, %40, %cst_12 [1] : vector<8x32xf32> to vector<8xf32>
    %42 = vector.shape_cast %41 : vector<8xf32> to vector<8x1xf32>
    %cst_13 = arith.constant 0.000000e+00 : f32
    %43 = vector.broadcast %cst_13 : f32 to vector<8x1xf32>
    %44 = arith.select %19, %42, %43 : vector<8x1xi1>, vector<8x1xf32>
    %45 = vector.shape_cast %38 : vector<8x1xf32> to vector<1x8x1xf32>
    %cst_14 = arith.constant dense<0.000000e+00> : vector<1xf32>
    %46 = vector.multi_reduction <add>, %45, %cst_14 [1, 2] : vector<1x8x1xf32> to vector<1xf32>
    %47 = vector.shape_cast %46 : vector<1xf32> to vector<1x1x1xf32>
    %48 = vector.extract %47[0, 0, 0] : f32 from vector<1x1x1xf32>
    %49 = arith.addf %cst, %48 : f32
    %50 = vector.shape_cast %44 : vector<8x1xf32> to vector<1x8x1xf32>
    %cst_15 = arith.constant dense<0.000000e+00> : vector<1xf32>
    %51 = vector.multi_reduction <add>, %50, %cst_15 [1, 2] : vector<1x8x1xf32> to vector<1xf32>
    %52 = vector.shape_cast %51 : vector<1xf32> to vector<1x1x1xf32>
    %53 = vector.extract %52[0, 0, 0] : f32 from vector<1x1x1xf32>
    %54 = arith.addf %cst_1, %53 : f32
    %c1_i32_16 = arith.constant 1 : i32
    %55 = tpu.iota {dimensions = array<i32: 0>} : vector<8x128xi32>
    %56 = tpu.iota {dimensions = array<i32: 1>} : vector<8x128xi32>
    %c0_17 = arith.constant 0 : index
    %c0_18 = arith.constant 0 : index
    %c0_19 = arith.constant 0 : index
    %57 = vector.load %arg5[%c0_17, %c0_18, %c0_19] : memref<1x8x128xf32, #tpu.memory_space<vmem>>, vector<1x8x128xf32>
    %58 = vector.shape_cast %57 : vector<1x8x128xf32> to vector<8x128xf32>
    %c0_i32_20 = arith.constant 0 : i32
    %59 = vector.broadcast %c0_i32_20 : i32 to vector<8x128xi32>
    %60 = arith.cmpi eq, %55, %59 : vector<8x128xi32>
    %c0_i32_21 = arith.constant 0 : i32
    %61 = vector.broadcast %c0_i32_21 : i32 to vector<8x128xi32>
    %62 = arith.cmpi eq, %56, %61 : vector<8x128xi32>
    %63 = arith.andi %60, %62 : vector<8x128xi1>
    %cst_22 = arith.constant 0.000000e+00 : f32
    %64 = vector.broadcast %49 : f32 to vector<8x128xf32>
    %65 = vector.broadcast %cst_22 : f32 to vector<8x128xf32>
    %66 = arith.select %63, %64, %65 : vector<8x128xi1>, vector<8x128xf32>
    %c0_i32_23 = arith.constant 0 : i32
    %67 = vector.broadcast %c0_i32_23 : i32 to vector<8x128xi32>
    %68 = arith.cmpi eq, %55, %67 : vector<8x128xi32>
    %c1_i32_24 = arith.constant 1 : i32
    %69 = vector.broadcast %c1_i32_24 : i32 to vector<8x128xi32>
    %70 = arith.cmpi eq, %56, %69 : vector<8x128xi32>
    %71 = arith.andi %68, %70 : vector<8x128xi1>
    %cst_25 = arith.constant 0.000000e+00 : f32
    %72 = vector.broadcast %54 : f32 to vector<8x128xf32>
    %73 = vector.broadcast %cst_25 : f32 to vector<8x128xf32>
    %74 = arith.select %71, %72, %73 : vector<8x128xi1>, vector<8x128xf32>
    %75 = arith.addf %66, %74 : vector<8x128xf32>
    %76 = arith.addf %58, %75 : vector<8x128xf32>
    %c0_26 = arith.constant 0 : index
    %c0_27 = arith.constant 0 : index
    %c0_28 = arith.constant 0 : index
    %77 = vector.load %arg5[%c0_26, %c0_27, %c0_28] : memref<1x8x128xf32, #tpu.memory_space<vmem>>, vector<1x8x128xf32>
    %78 = vector.shape_cast %77 : vector<1x8x128xf32> to vector<8x128xf32>
    %79 = vector.shape_cast %76 : vector<8x128xf32> to vector<1x8x128xf32>
    tpu.vector_store %arg5[%c0_26, %c0_27, %c0_28], %79 {strides = array<i32>} : memref<1x8x128xf32, #tpu.memory_space<vmem>>, vector<1x8x128xf32>,
    return
  }
  func.func @transform_0(%arg0: i32, %arg1: i32) -> (i32, i32) {
    %c1_i32 = arith.constant 1 : i32
    %0 = arith.muli %arg0, %c1_i32 : i32
    %1 = arith.addi %0, %arg1 : i32
    %c0_i32 = arith.constant 0 : i32
    %2 = arith.minsi %1, %c0_i32 : i32
    %c0_i32_0 = arith.constant 0 : i32
    %c0_i32_1 = arith.constant 0 : i32
    return %2, %c0_i32_0 : i32, i32
  }
  func.func @transform_1(%arg0: i32, %arg1: i32) -> (i32, i32) {
    %c1_i32 = arith.constant 1 : i32
    %0 = arith.muli %arg0, %c1_i32 : i32
    %1 = arith.addi %0, %arg1 : i32
    %c0_i32 = arith.constant 0 : i32
    %2 = arith.minsi %1, %c0_i32 : i32
    %c0_i32_0 = arith.constant 0 : i32
    %c0_i32_1 = arith.constant 0 : i32
    return %2, %c0_i32_0 : i32, i32
  }
  func.func @transform_2(%arg0: i32, %arg1: i32) -> (i32, i32) {
    %c1_i32 = arith.constant 1 : i32
    %0 = arith.muli %arg0, %c1_i32 : i32
    %1 = arith.addi %0, %arg1 : i32
    %c0_i32 = arith.constant 0 : i32
    %2 = arith.minsi %1, %c0_i32 : i32
    %c0_i32_0 = arith.constant 0 : i32
    %c0_i32_1 = arith.constant 0 : i32
    return %2, %c0_i32_0 : i32, i32
  }
  func.func @transform_3(%arg0: i32, %arg1: i32) -> (i32, i32, i32) {
    %c0_i32 = arith.constant 0 : i32
    %c0_i32_0 = arith.constant 0 : i32
    %c0_i32_1 = arith.constant 0 : i32
    return %arg0, %c0_i32, %c0_i32_0 : i32, i32, i32
  }
}

</mosaic_0001>

<llo_original>
// kernel: tpu_custom_call.1
$region0: #{tpu_custom_call.1}
  #allocation0 [shape = 'u32[]', space=smem, size = 0x4, offset = 0x4, fixed_abs, tag = 'smem constant byte address 0x4 - core index']
  #allocation1 [shape = 'u32[144,128]{1,0:T(1,128)}', space=vmem, size = 0x12000, scoped, tag = 'internal scratch']
  %s0 = inlined_call_operand.vmem [shape: s32[8,1], index: 0, kind: input, shape index: {}]
  %s1 = inlined_call_operand.vmem [shape: f32[8,32], index: 1, kind: input, shape index: {}]
  %s2 = inlined_call_operand.hbm [shape: f32[8,32], index: 2, kind: input, shape index: {}]
  %s3 = inlined_call_operand.hbm [shape: f32[1,8,128], index: 3, kind: output, shape index: {}]
  %s4 = sld [smem:[#allocation0]]
  $region30: #{tpu_custom_call.1} parent=0
    _
  %s6 = ssub.s32 1, %s4
  %s7 = scalar_select 0, %s6, %s4
  $region1: #{tpu_custom_call.1} parent=0
    #allocation2 [shape = 'u8[4096]{0}', space=vmem, size = 0x1000, scoped, tag = 'input window, operand 2, single buffered']
    #allocation3 [shape = 's32[1]{0}', space=sflag, size = 0x4, scoped, tag = 'scoped memory for tpu_custom_call.1']
    #allocation4 [shape = 's32[1]{0}', space=sflag, size = 0x4, scoped, tag = 'scoped memory for tpu_custom_call.1']
    #allocation5 [shape = 'u8[4096]{0}', space=vmem, size = 0x1000, scoped, tag = 'output window, operand 0, single buffered']
    %8 = vsyncpa [#allocation3], 0
    %9 = vsyncpa [#allocation4], 0
    // Predicated region
    $region2: #{tpu_custom_call.1} parent=1 // pred_check
      _
    $region3: #{tpu_custom_call.1} parent=1 // pred_check_branch
      %11 = sbr.rel (0) target = $region5
    $region4: #{tpu_custom_call.1} parent=1 // pred_region
      %s12 = sadd.s32 0, 0
      %p13 = scmp.lt.s32.totalorder %s12, 0
      %s14 = scalar_select %p13, %s12, 0
      %p15 = scmp.lt.s32.totalorder %s14, 0
      %s16 = scalar_select %p15, %s14, 0
      %s17 = smul.addr %s16, 8
      %s18 = scalar_lea.vmem %s0, %s17
      %s19 = sadd.s32 0, 0
      %p20 = scmp.lt.s32.totalorder %s19, 0
      %s21 = scalar_select %p20, %s19, 0
    $region5: #{tpu_custom_call.1} parent=1 // pred_fallthru
      _
    // Predicated region
    $region6: #{tpu_custom_call.1} parent=1 // pred_check
      _
    $region7: #{tpu_custom_call.1} parent=1 // pred_check_branch
      %23 = sbr.rel (0) target = $region9
    $region8: #{tpu_custom_call.1} parent=1 // pred_region
      %s24 = sadd.s32 0, 0
      %p25 = scmp.lt.s32.totalorder %s24, 0
      %s26 = scalar_select %p25, %s24, 0
      %p27 = scmp.lt.s32.totalorder %s26, 0
      %s28 = scalar_select %p27, %s26, 0
      %s29 = smul.addr %s28, 8
      %s30 = scalar_lea.vmem %s1, %s29
      %s31 = sadd.s32 0, 0
      %p32 = scmp.lt.s32.totalorder %s31, 0
      %s33 = scalar_select %p32, %s31, 0
    $region9: #{tpu_custom_call.1} parent=1 // pred_fallthru
      _
    // Predicated region
    $region10: #{tpu_custom_call.1} parent=1 // pred_check
      _
    $region11: #{tpu_custom_call.1} parent=1 // pred_check_branch
      %35 = sbr.rel (0) target = $region13
    $region12: #{tpu_custom_call.1} parent=1 // pred_region
      %s36 = sadd.s32 0, 0
      %p37 = scmp.lt.s32.totalorder %s36, 0
      %s38 = scalar_select %p37, %s36, 0
      %s40 = ssub.s32 128, 128
      %41 = vsyncadd [#allocation3], %s40
      %s42 = smul.addr %s38, 128
      %s43 = scalar_lea.hbm %s2, %s42
      %s45 = sshll.u32 [#allocation2], 4
      %s46 = int_to_ptr.vmem [resolvable:$true] %s45
      %48 = dma.hbm_to_vmem [thread:$0]  %s43, 128, %s46, [#allocation3]
    $region13: #{tpu_custom_call.1} parent=1 // pred_fallthru
      _
    // Predicated region
    $region14: #{tpu_custom_call.1} parent=1 // pred_check
      _
    $region15: #{tpu_custom_call.1} parent=1 // pred_check_branch
      %50 = sbr.rel (0) target = $region17
    $region16: #{tpu_custom_call.1} parent=1 // pred_region
      %51 = dma.done [#allocation3], 128
    $region17: #{tpu_custom_call.1} parent=1 // pred_fallthru
      _
    %s52 = sadd.s32 0, 0
    %p53 = scmp.lt.s32.totalorder %s52, 0
    %s54 = scalar_select %p53, %s52, 0
    %p55 = scmp.lt.s32.totalorder %s54, 0
    %s56 = scalar_select %p55, %s54, 0
    %s57 = smul.addr %s56, 8
    %s58 = scalar_lea.vmem %s0, %s57
    %s59 = sadd.s32 0, 0
    %p60 = scmp.lt.s32.totalorder %s59, 0
    %s61 = scalar_select %p60, %s59, 0
    %p62 = scmp.lt.s32.totalorder %s61, 0
    %s63 = scalar_select %p62, %s61, 0
    %s64 = smul.addr %s63, 8
    %s65 = scalar_lea.vmem %s1, %s64
    %s66 = sadd.s32 0, 0
    %p67 = scmp.lt.s32.totalorder %s66, 0
    %s68 = scalar_select %p67, %s66, 0
    %p69 = scmp.lt.s32.totalorder %s68, 0
    %s70 = scalar_select %p69, %s68, 0
    %s71 = smul.addr %s70, 8
    %s72 = scalar_lea.vmem %s0, %s71
    %s73 = sadd.s32 0, 0
    %p74 = scmp.lt.s32.totalorder %s73, 0
    %s75 = scalar_select %p74, %s73, 0
    %s76 = sadd.s32 0, 0
    %p77 = scmp.lt.s32.totalorder %s76, 0
    %s78 = scalar_select %p77, %s76, 0
    %p79 = scmp.lt.s32.totalorder %s78, 0
    %s80 = scalar_select %p79, %s78, 0
    %s81 = smul.addr %s80, 8
    %s82 = scalar_lea.vmem %s1, %s81
    %s83 = sadd.s32 0, 0
    %p84 = scmp.lt.s32.totalorder %s83, 0
    %s85 = scalar_select %p84, %s83, 0
    %s86 = sadd.s32 0, 0
    %p87 = scmp.lt.s32.totalorder %s86, 0
    %s88 = scalar_select %p87, %s86, 0
    %s89 = sadd.s32 0, 0
    %p90 = scmp.eq.s32.totalorder 0, 0
    // Predicated region
    $region18: #{tpu_custom_call.1} parent=1 // pred_check
      %p91 = pneg %p90
    $region19: #{tpu_custom_call.1} parent=1 // pred_check_branch
      %93 = sbr.rel (%p91) target = $region21
    $region20: #{tpu_custom_call.1} parent=1 // pred_region
      %94 = vst [vmem:[#allocation5] sm:$0xff] 0.0
    $region21: #{tpu_custom_call.1} parent=1 // pred_fallthru
      _
    %v95 = vld [vmem:[%s82] sm:$0xff]
    %v96 = vld [vmem:[#allocation2] sm:$0xff]
    %v97 = vld [vmem:[%s72] sm:$0xff]
    %v98 = vlaneseq
    %v99 = vshrl.u32 %v98, 7
    %s100 = smul.u32 %s89, 8
    %s101 = sadd.s32 %s100, 0
    %v102 = vstv %s101
    %v103 = vadd.s32 %v99, %v102
    %vm104 = vcmp.lt.s32.totalorder %v103, 8
    %vm105 = vcmask 261120
    %v106 = vsel %vm105, %v95, -inf
    %107 = vmax.xlane.f32.xlu0 %v106
    %v108 = vpop.xlane.xlu0 %107
    %v109 = vsub.f32 %v95, %v108
    %v110 = vmul.f32 %v109, 1.442695
    %v111 = vpow.pop %v110
    %v112 = vsel %vm105, %v111, 0.0
    %113 = vadd.xlane.f32.xlu0 %v112
    %v114 = vpop.xlane.xlu0 %113
    %v115 = vlog2.pop %v114
    %v116 = vmul.f32 %v115, 0.6931472
    %v117 = vadd.f32 %v108, %v116
    %v118 = vlaneseq
    %v119 = vand.u32 %v118, 127
    %120 = vset.pattern.permute.xlu0 0
    %121 = vperm.xlu0 %120, %v97
    %v122 = vpop.permute.xlu0 %121
    %vm123 = vcmp.eq.s32.totalorder %v119, %v122
    %v124 = vsel %vm123, %v95, 0.0
    %v125 = vsel %vm105, %v124, 0.0
    %126 = vadd.xlane.f32.xlu0 %v125
    %v127 = vpop.xlane.xlu0 %126
    %v128 = vsub.f32 %v117, %v127
    %v129 = vsel %vm104, %v128, 0.0
    %v130 = vsub.f32 %v95, %v96
    %v131 = vmul.f32 %v130, %v130
    %v132 = vsel %vm105, %v131, 0.0
    %133 = vadd.xlane.f32.xlu0 %v132
    %v134 = vpop.xlane.xlu0 %133
    %v135 = vsel %vm104, %v134, 0.0
    %vm136 = vcmask 7168
    %v137 = vsel %vm136, %v129, 0.0
    %138 = vadd.xlane.f32.xlu0 %v137
    %v139 = vpop.xlane.xlu0 %138
    %v140 = vrot.slane %v139, 4
    %v141 = vadd.f32 %v139, %v140
    %v142 = vrot.slane %v141, 2
    %v143 = vadd.f32 %v141, %v142
    %v144 = vrot.slane %v143, 1
    %v145 = vadd.f32 %v143, %v144
    %s146 = vtos %v145
    %s147 = sadd.f32 %s146, 0.0
    %v148 = vsel %vm136, %v135, 0.0
    %149 = vadd.xlane.f32.xlu0 %v148
    %v150 = vpop.xlane.xlu0 %149
    %v151 = vrot.slane %v150, 4
    %v152 = vadd.f32 %v150, %v151
    %v153 = vrot.slane %v152, 2
    %v154 = vadd.f32 %v152, %v153
    %v155 = vrot.slane %v154, 1
    %v156 = vadd.f32 %v154, %v155
    %s157 = vtos %v156
    %s158 = sadd.f32 %s157, 0.0
    %v159 = vld [vmem:[#allocation5] sm:$0xff]
    %vm160 = vcmp.eq.s32.totalorder %v99, 0
    %vm161 = vcmp.eq.s32.totalorder %v119, 0
    %vm162 = vmand %vm160, %vm161
    %v163 = vstv %s147
    %v164 = vsel %vm162, %v163, 0.0
    %vm165 = vcmp.eq.s32.totalorder %v119, 1
    %vm166 = vmand %vm160, %vm165
    %v167 = vstv %s158
    %v168 = vsel %vm166, %v167, 0.0
    %v169 = vadd.f32 %v164, %v168
    %v170 = vadd.f32 %v159, %v169
    %171 = vst [vmem:[#allocation5] sm:$0xff] %v170
    // Predicated region
    $region22: #{tpu_custom_call.1} parent=1 // pred_check
      _
    $region23: #{tpu_custom_call.1} parent=1 // pred_check_branch
      %173 = sbr.rel (0) target = $region25
    $region24: #{tpu_custom_call.1} parent=1 // pred_region
      %s175 = ssub.s32 128, 128
      %176 = vsyncadd [#allocation4], %s175
      %s178 = sshll.u32 [#allocation5], 4
      %s179 = int_to_ptr.vmem [resolvable:$true] %s178
      %181 = dma.vmem_to_hbm [thread:$0]  %s179, 128, %s3, [#allocation4]
    $region25: #{tpu_custom_call.1} parent=1 // pred_fallthru
      _
    // Predicated region
    $region26: #{tpu_custom_call.1} parent=1 // pred_check
      _
    $region27: #{tpu_custom_call.1} parent=1 // pred_check_branch
      %183 = sbr.rel (0) target = $region29
    $region28: #{tpu_custom_call.1} parent=1 // pred_region
      %184 = dma.done [#allocation4], 128
    $region29: #{tpu_custom_call.1} parent=1 // pred_fallthru
      _
    %185 = vsyncpa [#allocation3], 1
    %186 = vsyncpa [#allocation4], 1

</llo_original>
